<compile_context>
chip_gen: v6e
topology: v6e:2x2x1
jax: 0.10.0
libtpu: 0.0.40
codegen_flags: <defaults>
</compile_context>

<pallas_src>
import jax
import jax.numpy as jnp
from jax import lax
from jax.experimental import pallas as pl
from jax.experimental.pallas import tpu as pltpu


def rnn_fc_kernel(x_ref, w_ref, b_ref, wfc_ref, bfc_ref, out_ref, h_ref):
    """One grid step processes a contiguous chunk of time steps with an
    in-kernel fori_loop. h_ref (VMEM scratch) carries the hidden state across
    chunks; the final FC is applied once, at the last chunk."""
    c = pl.program_id(0)

    @pl.when(c == 0)
    def _():
        h_ref[...] = jnp.zeros_like(h_ref)

    t_chunk = x_ref.shape[1]

    def step(t, h):
        # (B, 1, E) dynamic time slice straight from VMEM, squeezed to (B, E).
        x_t = x_ref[:, pl.ds(t, 1), :][:, 0, :]
        # Fused recurrence: single MXU matmul on [x_t | h] with [W_ih; W_hh].
        xh = jnp.concatenate([x_t, h], axis=-1)            # (B, E + H)
        return jnp.tanh(
            jnp.dot(xh, w_ref[...], preferred_element_type=jnp.float32)
            + b_ref[...]
        )

    # Short fixed chunks: fully unroll for LLO visibility; partial unroll
    # otherwise to keep compile time bounded.
    unroll = True if t_chunk <= 32 else 8
    h_new = lax.fori_loop(0, t_chunk, step, h_ref[...], unroll=unroll)
    h_ref[...] = h_new

    @pl.when(c == pl.num_programs(0) - 1)
    def _():
        logits = (jnp.dot(h_new, wfc_ref[...], preferred_element_type=jnp.float32)
                  + bfc_ref[...])
        out_ref[...] = logits.astype(out_ref.dtype)


def _pick_time_chunk(T, max_chunk=512):
    """Largest legal time chunk: whole sequence if it fits, otherwise the
    largest divisor of T that is a multiple of 8 and <= max_chunk."""
    if T <= max_chunk:
        return T
    for cand in range(max_chunk, 0, -1):
        if T % cand == 0 and cand % 8 == 0:
            return cand
    return T


def sentiment_rnn_forward(x_tokens, params, *, max_time_chunk=512):
    """x_tokens: (B, T) int32 token ids. Returns (B, num_classes) logits."""
    emb = params["embedding"]                      # (V, E)
    w_ih = params["w_ih"]                          # (E, H)  (= PyTorch weight_ih_l0.T)
    w_hh = params["w_hh"]                          # (H, H)  (= PyTorch weight_hh_l0.T)
    w = jnp.concatenate([w_ih, w_hh], axis=0)      # (E+H, H) fused recurrence weight
    b = params["b_ih"] + params["b_hh"]            # (1, H)   pre-summed bias
    w_fc = params["w_fc"]                          # (H, C)  (= PyTorch fc.weight.T)
    b_fc = params["b_fc"]                          # (1, C)

    B, T = x_tokens.shape
    E = emb.shape[1]
    H = w_hh.shape[0]
    C = w_fc.shape[1]

    # Embedding gather (glue, plain JAX). No transpose: kernel slices time
    # directly from the (B, T, E) layout.
    x_emb = jnp.take(emb, x_tokens, axis=0).astype(jnp.float32)   # (B, T, E)

    t_chunk = _pick_time_chunk(T, max_time_chunk)
    n_chunks = T // t_chunk

    out = pl.pallas_call(
        rnn_fc_kernel,
        out_shape=jax.ShapeDtypeStruct((B, C), jnp.float32),
        grid_spec=pltpu.PrefetchScalarGridSpec(
            num_scalar_prefetch=0,
            grid=(n_chunks,),
            in_specs=[
                pl.BlockSpec((B, t_chunk, E), lambda c: (0, c, 0)),  # activation chunk
                pl.BlockSpec((E + H, H), lambda c: (0, 0)),          # fused W
                pl.BlockSpec((1, H), lambda c: (0, 0)),              # fused bias
                pl.BlockSpec((H, C), lambda c: (0, 0)),              # W_fc
                pl.BlockSpec((1, C), lambda c: (0, 0)),              # b_fc
            ],
            out_specs=pl.BlockSpec((B, C), lambda c: (0, 0)),        # resident output
            scratch_shapes=[pltpu.VMEM((B, H), jnp.float32)],        # hidden state carry
        ),
        compiler_params=pltpu.CompilerParams(
            dimension_semantics=("arbitrary",),   # recurrence: chunks are sequential
        ),
    )(x_emb, w, b, w_fc, b_fc)
    return out


def init_params(key, vocab, embed_dim, rnn_out, num_classes):
    ks = jax.random.split(key, 7)
    scale = 0.1
    return {
        "embedding": scale * jax.random.normal(ks[0], (vocab, embed_dim), jnp.float32),
        "w_ih": scale * jax.random.normal(ks[1], (embed_dim, rnn_out), jnp.float32),
        "w_hh": scale * jax.random.normal(ks[2], (rnn_out, rnn_out), jnp.float32),
        "b_ih": scale * jax.random.normal(ks[3], (1, rnn_out), jnp.float32),
        "b_hh": scale * jax.random.normal(ks[4], (1, rnn_out), jnp.float32),
        "w_fc": scale * jax.random.normal(ks[5], (rnn_out, num_classes), jnp.float32),
        "b_fc": scale * jax.random.normal(ks[6], (1, num_classes), jnp.float32),
    }


def reference_forward(x_tokens, params):
    """Pure-JAX reference matching PyTorch nn.RNN(batch_first=True) semantics."""
    x_emb = jnp.take(params["embedding"], x_tokens, axis=0)  # (B, T, E)
    B, T, _ = x_emb.shape
    H = params["w_hh"].shape[0]
    h = jnp.zeros((B, H), jnp.float32)
    for t in range(T):
        h = jnp.tanh(x_emb[:, t, :] @ params["w_ih"] + params["b_ih"]
                     + h @ params["w_hh"] + params["b_hh"])
    return h @ params["w_fc"] + params["b_fc"]


if __name__ == "__main__":
    # Small shapes consistent with the module's forward.
    batch = 2
    seq_len = 8
    vocab = 32          # max_features
    embed_dim = 32
    rnn_out = 32
    num_classes = 2

    key = jax.random.PRNGKey(0)
    k_params, k_tokens = jax.random.split(key)
    params = init_params(k_params, vocab, embed_dim, rnn_out, num_classes)
    x_tokens = jax.random.randint(k_tokens, (batch, seq_len), 0, vocab, dtype=jnp.int32)

    logits = sentiment_rnn_forward(x_tokens, params)
    logits = jax.block_until_ready(logits)

    ref = reference_forward(x_tokens, params)
    assert logits.shape == (batch, num_classes)
    assert jnp.allclose(logits, ref, atol=1e-4, rtol=1e-4), "mismatch vs reference"

    print("KERNEL_OK")
</pallas_src>

<mosaic_0001>
module attributes {stable_mosaic.version = 11 : i64} {
  func.func @rnn_fc_kernel(%arg0: i32, %arg1: memref<2x8x32xf32, #tpu.memory_space<vmem>>, %arg2: memref<64x32xf32, #tpu.memory_space<vmem>>, %arg3: memref<1x32xf32, #tpu.memory_space<vmem>>, %arg4: memref<32x2xf32, #tpu.memory_space<vmem>>, %arg5: memref<1x2xf32, #tpu.memory_space<vmem>>, %arg6: memref<2x2xf32, #tpu.memory_space<vmem>>, %arg7: memref<2x32xf32, #tpu.memory_space<vmem>>) attributes {dimension_semantics = [#tpu.dimension_semantics<arbitrary>], iteration_bounds = array<i64: 1>, scalar_prefetch = 0 : i64, scratch_operands = 1 : i64, tpu.core_type = #tpu.core_type<tc>, window_params = [{transform_indices = @transform_0, window_bounds = array<i64: 2, 8, 32>}, {pipeline_mode = #tpu.pipeline_mode<synchronous>, transform_indices = @transform_1, window_bounds = array<i64: 64, 32>}, {pipeline_mode = #tpu.pipeline_mode<synchronous>, transform_indices = @transform_2, window_bounds = array<i64: 1, 32>}, {pipeline_mode = #tpu.pipeline_mode<synchronous>, transform_indices = @transform_3, window_bounds = array<i64: 32, 2>}, {pipeline_mode = #tpu.pipeline_mode<synchronous>, transform_indices = @transform_4, window_bounds = array<i64: 1, 2>}, {pipeline_mode = #tpu.pipeline_mode<synchronous>, transform_indices = @transform_5, window_bounds = array<i64: 2, 2>}]} {
    %c0_i32 = arith.constant 0 : i32
    %0 = arith.cmpi eq, %arg0, %c0_i32 : i32
    %1 = arith.extui %0 : i1 to i32
    %c0_i32_0 = arith.constant 0 : i32
    %2 = arith.cmpi ne, %1, %c0_i32_0 : i32
    scf.if %2 {
      %cst_62 = arith.constant 0.000000e+00 : f32
      %88 = vector.broadcast %cst_62 : f32 to vector<2x32xf32>
      %c0_63 = arith.constant 0 : index
      %c0_64 = arith.constant 0 : index
      %89 = vector.load %arg7[%c0_63, %c0_64] : memref<2x32xf32, #tpu.memory_space<vmem>>, vector<2x32xf32>
      tpu.vector_store %arg7[%c0_63, %c0_64], %88 {strides = array<i32>} : memref<2x32xf32, #tpu.memory_space<vmem>>, vector<2x32xf32>,
    } else {
    }
    %c0 = arith.constant 0 : index
    %c0_1 = arith.constant 0 : index
    %3 = vector.load %arg7[%c0, %c0_1] : memref<2x32xf32, #tpu.memory_space<vmem>>, vector<2x32xf32>
    %c0_i32_2 = arith.constant 0 : i32
    %c0_3 = arith.constant 0 : index
    %4 = arith.index_cast %c0_i32_2 : i32 to index
    %c0_4 = arith.constant 0 : index
    %5 = vector.load %arg1[%c0_3, %4, %c0_4] : memref<2x8x32xf32, #tpu.memory_space<vmem>>, vector<2x1x32xf32>
    %6 = vector.shape_cast %5 : vector<2x1x32xf32> to vector<2x32xf32>
    %7 = tpu.concatenate %6, %3 in 1 : vector<2x32xf32>, vector<2x32xf32> -> vector<2x64xf32>
    %c0_5 = arith.constant 0 : index
    %c0_6 = arith.constant 0 : index
    %8 = vector.load %arg2[%c0_5, %c0_6] : memref<64x32xf32, #tpu.memory_space<vmem>>, vector<64x32xf32>
    %cst = arith.constant dense<0.000000e+00> : vector<2x32xf32>
    %9 = tpu.matmul %7, %8, %cst {dimension_numbers = #tpu.dot_dimension_numbers<[1], [0], [0], [1], [0, 0, 1, 1], [], []>} : vector<2x64xf32>, vector<64x32xf32>, vector<2x32xf32> -> vector<2x32xf32>
    %c0_7 = arith.constant 0 : index
    %c0_8 = arith.constant 0 : index
    %10 = vector.load %arg3[%c0_7, %c0_8] : memref<1x32xf32, #tpu.memory_space<vmem>>, vector<1x32xf32>
    %11 = vector.broadcast %10 : vector<1x32xf32> to vector<2x32xf32>
    %12 = arith.addf %9, %11 : vector<2x32xf32>
    %13 = math.tanh %12 : vector<2x32xf32>
    %c1_i32 = arith.constant 1 : i32
    %c0_9 = arith.constant 0 : index
    %14 = arith.index_cast %c1_i32 : i32 to index
    %c0_10 = arith.constant 0 : index
    %15 = vector.load %arg1[%c0_9, %14, %c0_10] : memref<2x8x32xf32, #tpu.memory_space<vmem>>, vector<2x1x32xf32>
    %16 = vector.shape_cast %15 : vector<2x1x32xf32> to vector<2x32xf32>
    %17 = tpu.concatenate %16, %13 in 1 : vector<2x32xf32>, vector<2x32xf32> -> vector<2x64xf32>
    %c0_11 = arith.constant 0 : index
    %c0_12 = arith.constant 0 : index
    %18 = vector.load %arg2[%c0_11, %c0_12] : memref<64x32xf32, #tpu.memory_space<vmem>>, vector<64x32xf32>
    %cst_13 = arith.constant dense<0.000000e+00> : vector<2x32xf32>
    %19 = tpu.matmul %17, %18, %cst_13 {dimension_numbers = #tpu.dot_dimension_numbers<[1], [0], [0], [1], [0, 0, 1, 1], [], []>} : vector<2x64xf32>, vector<64x32xf32>, vector<2x32xf32> -> vector<2x32xf32>
    %c0_14 = arith.constant 0 : index
    %c0_15 = arith.constant 0 : index
    %20 = vector.load %arg3[%c0_14, %c0_15] : memref<1x32xf32, #tpu.memory_space<vmem>>, vector<1x32xf32>
    %21 = vector.broadcast %20 : vector<1x32xf32> to vector<2x32xf32>
    %22 = arith.addf %19, %21 : vector<2x32xf32>
    %23 = math.tanh %22 : vector<2x32xf32>
    %c2_i32 = arith.constant 2 : i32
    %c0_16 = arith.constant 0 : index
    %24 = arith.index_cast %c2_i32 : i32 to index
    %c0_17 = arith.constant 0 : index
    %25 = vector.load %arg1[%c0_16, %24, %c0_17] : memref<2x8x32xf32, #tpu.memory_space<vmem>>, vector<2x1x32xf32>
    %26 = vector.shape_cast %25 : vector<2x1x32xf32> to vector<2x32xf32>
    %27 = tpu.concatenate %26, %23 in 1 : vector<2x32xf32>, vector<2x32xf32> -> vector<2x64xf32>
    %c0_18 = arith.constant 0 : index
    %c0_19 = arith.constant 0 : index
    %28 = vector.load %arg2[%c0_18, %c0_19] : memref<64x32xf32, #tpu.memory_space<vmem>>, vector<64x32xf32>
    %cst_20 = arith.constant dense<0.000000e+00> : vector<2x32xf32>
    %29 = tpu.matmul %27, %28, %cst_20 {dimension_numbers = #tpu.dot_dimension_numbers<[1], [0], [0], [1], [0, 0, 1, 1], [], []>} : vector<2x64xf32>, vector<64x32xf32>, vector<2x32xf32> -> vector<2x32xf32>
    %c0_21 = arith.constant 0 : index
    %c0_22 = arith.constant 0 : index
    %30 = vector.load %arg3[%c0_21, %c0_22] : memref<1x32xf32, #tpu.memory_space<vmem>>, vector<1x32xf32>
    %31 = vector.broadcast %30 : vector<1x32xf32> to vector<2x32xf32>
    %32 = arith.addf %29, %31 : vector<2x32xf32>
    %33 = math.tanh %32 : vector<2x32xf32>
    %c3_i32 = arith.constant 3 : i32
    %c0_23 = arith.constant 0 : index
    %34 = arith.index_cast %c3_i32 : i32 to index
    %c0_24 = arith.constant 0 : index
    %35 = vector.load %arg1[%c0_23, %34, %c0_24] : memref<2x8x32xf32, #tpu.memory_space<vmem>>, vector<2x1x32xf32>
    %36 = vector.shape_cast %35 : vector<2x1x32xf32> to vector<2x32xf32>
    %37 = tpu.concatenate %36, %33 in 1 : vector<2x32xf32>, vector<2x32xf32> -> vector<2x64xf32>
    %c0_25 = arith.constant 0 : index
    %c0_26 = arith.constant 0 : index
    %38 = vector.load %arg2[%c0_25, %c0_26] : memref<64x32xf32, #tpu.memory_space<vmem>>, vector<64x32xf32>
    %cst_27 = arith.constant dense<0.000000e+00> : vector<2x32xf32>
    %39 = tpu.matmul %37, %38, %cst_27 {dimension_numbers = #tpu.dot_dimension_numbers<[1], [0], [0], [1], [0, 0, 1, 1], [], []>} : vector<2x64xf32>, vector<64x32xf32>, vector<2x32xf32> -> vector<2x32xf32>
    %c0_28 = arith.constant 0 : index
    %c0_29 = arith.constant 0 : index
    %40 = vector.load %arg3[%c0_28, %c0_29] : memref<1x32xf32, #tpu.memory_space<vmem>>, vector<1x32xf32>
    %41 = vector.broadcast %40 : vector<1x32xf32> to vector<2x32xf32>
    %42 = arith.addf %39, %41 : vector<2x32xf32>
    %43 = math.tanh %42 : vector<2x32xf32>
    %c4_i32 = arith.constant 4 : i32
    %c0_30 = arith.constant 0 : index
    %44 = arith.index_cast %c4_i32 : i32 to index
    %c0_31 = arith.constant 0 : index
    %45 = vector.load %arg1[%c0_30, %44, %c0_31] : memref<2x8x32xf32, #tpu.memory_space<vmem>>, vector<2x1x32xf32>
    %46 = vector.shape_cast %45 : vector<2x1x32xf32> to vector<2x32xf32>
    %47 = tpu.concatenate %46, %43 in 1 : vector<2x32xf32>, vector<2x32xf32> -> vector<2x64xf32>
    %c0_32 = arith.constant 0 : index
    %c0_33 = arith.constant 0 : index
    %48 = vector.load %arg2[%c0_32, %c0_33] : memref<64x32xf32, #tpu.memory_space<vmem>>, vector<64x32xf32>
    %cst_34 = arith.constant dense<0.000000e+00> : vector<2x32xf32>
    %49 = tpu.matmul %47, %48, %cst_34 {dimension_numbers = #tpu.dot_dimension_numbers<[1], [0], [0], [1], [0, 0, 1, 1], [], []>} : vector<2x64xf32>, vector<64x32xf32>, vector<2x32xf32> -> vector<2x32xf32>
    %c0_35 = arith.constant 0 : index
    %c0_36 = arith.constant 0 : index
    %50 = vector.load %arg3[%c0_35, %c0_36] : memref<1x32xf32, #tpu.memory_space<vmem>>, vector<1x32xf32>
    %51 = vector.broadcast %50 : vector<1x32xf32> to vector<2x32xf32>
    %52 = arith.addf %49, %51 : vector<2x32xf32>
    %53 = math.tanh %52 : vector<2x32xf32>
    %c5_i32 = arith.constant 5 : i32
    %c0_37 = arith.constant 0 : index
    %54 = arith.index_cast %c5_i32 : i32 to index
    %c0_38 = arith.constant 0 : index
    %55 = vector.load %arg1[%c0_37, %54, %c0_38] : memref<2x8x32xf32, #tpu.memory_space<vmem>>, vector<2x1x32xf32>
    %56 = vector.shape_cast %55 : vector<2x1x32xf32> to vector<2x32xf32>
    %57 = tpu.concatenate %56, %53 in 1 : vector<2x32xf32>, vector<2x32xf32> -> vector<2x64xf32>
    %c0_39 = arith.constant 0 : index
    %c0_40 = arith.constant 0 : index
    %58 = vector.load %arg2[%c0_39, %c0_40] : memref<64x32xf32, #tpu.memory_space<vmem>>, vector<64x32xf32>
    %cst_41 = arith.constant dense<0.000000e+00> : vector<2x32xf32>
    %59 = tpu.matmul %57, %58, %cst_41 {dimension_numbers = #tpu.dot_dimension_numbers<[1], [0], [0], [1], [0, 0, 1, 1], [], []>} : vector<2x64xf32>, vector<64x32xf32>, vector<2x32xf32> -> vector<2x32xf32>
    %c0_42 = arith.constant 0 : index
    %c0_43 = arith.constant 0 : index
    %60 = vector.load %arg3[%c0_42, %c0_43] : memref<1x32xf32, #tpu.memory_space<vmem>>, vector<1x32xf32>
    %61 = vector.broadcast %60 : vector<1x32xf32> to vector<2x32xf32>
    %62 = arith.addf %59, %61 : vector<2x32xf32>
    %63 = math.tanh %62 : vector<2x32xf32>
    %c6_i32 = arith.constant 6 : i32
    %c0_44 = arith.constant 0 : index
    %64 = arith.index_cast %c6_i32 : i32 to index
    %c0_45 = arith.constant 0 : index
    %65 = vector.load %arg1[%c0_44, %64, %c0_45] : memref<2x8x32xf32, #tpu.memory_space<vmem>>, vector<2x1x32xf32>
    %66 = vector.shape_cast %65 : vector<2x1x32xf32> to vector<2x32xf32>
    %67 = tpu.concatenate %66, %63 in 1 : vector<2x32xf32>, vector<2x32xf32> -> vector<2x64xf32>
    %c0_46 = arith.constant 0 : index
    %c0_47 = arith.constant 0 : index
    %68 = vector.load %arg2[%c0_46, %c0_47] : memref<64x32xf32, #tpu.memory_space<vmem>>, vector<64x32xf32>
    %cst_48 = arith.constant dense<0.000000e+00> : vector<2x32xf32>
    %69 = tpu.matmul %67, %68, %cst_48 {dimension_numbers = #tpu.dot_dimension_numbers<[1], [0], [0], [1], [0, 0, 1, 1], [], []>} : vector<2x64xf32>, vector<64x32xf32>, vector<2x32xf32> -> vector<2x32xf32>
    %c0_49 = arith.constant 0 : index
    %c0_50 = arith.constant 0 : index
    %70 = vector.load %arg3[%c0_49, %c0_50] : memref<1x32xf32, #tpu.memory_space<vmem>>, vector<1x32xf32>
    %71 = vector.broadcast %70 : vector<1x32xf32> to vector<2x32xf32>
    %72 = arith.addf %69, %71 : vector<2x32xf32>
    %73 = math.tanh %72 : vector<2x32xf32>
    %c7_i32 = arith.constant 7 : i32
    %c0_51 = arith.constant 0 : index
    %74 = arith.index_cast %c7_i32 : i32 to index
    %c0_52 = arith.constant 0 : index
    %75 = vector.load %arg1[%c0_51, %74, %c0_52] : memref<2x8x32xf32, #tpu.memory_space<vmem>>, vector<2x1x32xf32>
    %76 = vector.shape_cast %75 : vector<2x1x32xf32> to vector<2x32xf32>
    %77 = tpu.concatenate %76, %73 in 1 : vector<2x32xf32>, vector<2x32xf32> -> vector<2x64xf32>
    %c0_53 = arith.constant 0 : index
    %c0_54 = arith.constant 0 : index
    %78 = vector.load %arg2[%c0_53, %c0_54] : memref<64x32xf32, #tpu.memory_space<vmem>>, vector<64x32xf32>
    %cst_55 = arith.constant dense<0.000000e+00> : vector<2x32xf32>
    %79 = tpu.matmul %77, %78, %cst_55 {dimension_numbers = #tpu.dot_dimension_numbers<[1], [0], [0], [1], [0, 0, 1, 1], [], []>} : vector<2x64xf32>, vector<64x32xf32>, vector<2x32xf32> -> vector<2x32xf32>
    %c0_56 = arith.constant 0 : index
    %c0_57 = arith.constant 0 : index
    %80 = vector.load %arg3[%c0_56, %c0_57] : memref<1x32xf32, #tpu.memory_space<vmem>>, vector<1x32xf32>
    %81 = vector.broadcast %80 : vector<1x32xf32> to vector<2x32xf32>
    %82 = arith.addf %79, %81 : vector<2x32xf32>
    %83 = math.tanh %82 : vector<2x32xf32>
    %c8_i32 = arith.constant 8 : i32
    %c0_58 = arith.constant 0 : index
    %c0_59 = arith.constant 0 : index
    %84 = vector.load %arg7[%c0_58, %c0_59] : memref<2x32xf32, #tpu.memory_space<vmem>>, vector<2x32xf32>
    tpu.vector_store %arg7[%c0_58, %c0_59], %83 {strides = array<i32>} : memref<2x32xf32, #tpu.memory_space<vmem>>, vector<2x32xf32>,
    %c0_i32_60 = arith.constant 0 : i32
    %85 = arith.cmpi eq, %arg0, %c0_i32_60 : i32
    %86 = arith.extui %85 : i1 to i32
    %c0_i32_61 = arith.constant 0 : i32
    %87 = arith.cmpi ne, %86, %c0_i32_61 : i32
    scf.if %87 {
      %c0_62 = arith.constant 0 : index
      %c0_63 = arith.constant 0 : index
      %88 = vector.load %arg4[%c0_62, %c0_63] : memref<32x2xf32, #tpu.memory_space<vmem>>, vector<32x2xf32>
      %cst_64 = arith.constant dense<0.000000e+00> : vector<2x2xf32>
      %89 = tpu.matmul %83, %88, %cst_64 {dimension_numbers = #tpu.dot_dimension_numbers<[1], [0], [0], [1], [0, 0, 1, 1], [], []>} : vector<2x32xf32>, vector<32x2xf32>, vector<2x2xf32> -> vector<2x2xf32>
      %c0_65 = arith.constant 0 : index
      %c0_66 = arith.constant 0 : index
      %90 = vector.load %arg5[%c0_65, %c0_66] : memref<1x2xf32, #tpu.memory_space<vmem>>, vector<1x2xf32>
      %91 = vector.broadcast %90 : vector<1x2xf32> to vector<2x2xf32>
      %92 = arith.addf %89, %91 : vector<2x2xf32>
      %c0_67 = arith.constant 0 : index
      %c0_68 = arith.constant 0 : index
      %93 = vector.load %arg6[%c0_67, %c0_68] : memref<2x2xf32, #tpu.memory_space<vmem>>, vector<2x2xf32>
      tpu.vector_store %arg6[%c0_67, %c0_68], %92 {strides = array<i32>} : memref<2x2xf32, #tpu.memory_space<vmem>>, vector<2x2xf32>,
    } else {
    }
    return
  }
  func.func @transform_0(%arg0: i32) -> (i32, i32, i32) {
    %c0_i32 = arith.constant 0 : i32
    %c0_i32_0 = arith.constant 0 : i32
    %c0_i32_1 = arith.constant 0 : i32
    return %c0_i32, %arg0, %c0_i32_0 : i32, i32, i32
  }
  func.func @transform_1(%arg0: i32) -> (i32, i32) {
    %c0_i32 = arith.constant 0 : i32
    %c0_i32_0 = arith.constant 0 : i32
    %c0_i32_1 = arith.constant 0 : i32
    return %c0_i32, %c0_i32_0 : i32, i32
  }
  func.func @transform_2(%arg0: i32) -> (i32, i32) {
    %c0_i32 = arith.constant 0 : i32
    %c0_i32_0 = arith.constant 0 : i32
    %c0_i32_1 = arith.constant 0 : i32
    return %c0_i32, %c0_i32_0 : i32, i32
  }
  func.func @transform_3(%arg0: i32) -> (i32, i32) {
    %c0_i32 = arith.constant 0 : i32
    %c0_i32_0 = arith.constant 0 : i32
    %c0_i32_1 = arith.constant 0 : i32
    return %c0_i32, %c0_i32_0 : i32, i32
  }
  func.func @transform_4(%arg0: i32) -> (i32, i32) {
    %c0_i32 = arith.constant 0 : i32
    %c0_i32_0 = arith.constant 0 : i32
    %c0_i32_1 = arith.constant 0 : i32
    return %c0_i32, %c0_i32_0 : i32, i32
  }
  func.func @transform_5(%arg0: i32) -> (i32, i32) {
    %c0_i32 = arith.constant 0 : i32
    %c0_i32_0 = arith.constant 0 : i32
    %c0_i32_1 = arith.constant 0 : i32
    return %c0_i32, %c0_i32_0 : i32, i32
  }
}

</mosaic_0001>

<llo_original>
// kernel: tpu_custom_call.1
$region0: #{tpu_custom_call.1}
  #allocation0 [shape = 'u32[]', space=smem, size = 0x4, offset = 0x4, fixed_abs, tag = 'smem constant byte address 0x4 - core index']
  #allocation1 [shape = 'u32[144,128]{1,0:T(1,128)}', space=vmem, size = 0x12000, scoped, tag = 'internal scratch']
  #allocation2 [shape = 'f32[2,32]{1,0:T(2,128)}', space=vmem, size = 0x400, scoped, tag = 'scratch operand']
  %s0 = inlined_call_operand.vmem [shape: f32[2,8,32], index: 0, kind: input, shape index: {}]
  %s1 = inlined_call_operand.vmem [shape: f32[64,32], index: 1, kind: input, shape index: {}]
  %s2 = inlined_call_operand.vmem [shape: f32[1,32], index: 2, kind: input, shape index: {}]
  %s3 = inlined_call_operand.vmem [shape: f32[32,2], index: 3, kind: input, shape index: {}]
  %s4 = inlined_call_operand.vmem [shape: f32[1,2], index: 4, kind: input, shape index: {}]
  %s5 = inlined_call_operand.hbm [shape: f32[2,2], index: 5, kind: output, shape index: {}]
  %s6 = sld [smem:[#allocation0]]
  $region38: #{tpu_custom_call.1} parent=0
    _
  %s8 = ssub.s32 1, %s6
  %s9 = scalar_select 0, %s8, %s6
  $region1: #{tpu_custom_call.1} parent=0
    #allocation3 [shape = 'u8[1024]{0}', space=vmem, size = 0x400, scoped, tag = 'output window, operand 0, single buffered']
    #allocation4 [shape = 's32[1]{0}', space=sflag, size = 0x4, scoped, tag = 'scoped memory for tpu_custom_call.1']
    %10 = vsyncpa [#allocation4], 0
    // Predicated region
    $region2: #{tpu_custom_call.1} parent=1 // pred_check
      _
    $region3: #{tpu_custom_call.1} parent=1 // pred_check_branch
      %12 = sbr.rel (0) target = $region5
    $region4: #{tpu_custom_call.1} parent=1 // pred_region
      _
    $region5: #{tpu_custom_call.1} parent=1 // pred_fallthru
      _
    // Predicated region
    $region6: #{tpu_custom_call.1} parent=1 // pred_check
      _
    $region7: #{tpu_custom_call.1} parent=1 // pred_check_branch
      %14 = sbr.rel (0) target = $region9
    $region8: #{tpu_custom_call.1} parent=1 // pred_region
      _
    $region9: #{tpu_custom_call.1} parent=1 // pred_fallthru
      _
    // Predicated region
    $region10: #{tpu_custom_call.1} parent=1 // pred_check
      _
    $region11: #{tpu_custom_call.1} parent=1 // pred_check_branch
      %16 = sbr.rel (0) target = $region13
    $region12: #{tpu_custom_call.1} parent=1 // pred_region
      _
    $region13: #{tpu_custom_call.1} parent=1 // pred_fallthru
      _
    // Predicated region
    $region14: #{tpu_custom_call.1} parent=1 // pred_check
      _
    $region15: #{tpu_custom_call.1} parent=1 // pred_check_branch
      %18 = sbr.rel (0) target = $region17
    $region16: #{tpu_custom_call.1} parent=1 // pred_region
      _
    $region17: #{tpu_custom_call.1} parent=1 // pred_fallthru
      _
    // Predicated region
    $region18: #{tpu_custom_call.1} parent=1 // pred_check
      _
    $region19: #{tpu_custom_call.1} parent=1 // pred_check_branch
      %20 = sbr.rel (0) target = $region21
    $region20: #{tpu_custom_call.1} parent=1 // pred_region
      _
    $region21: #{tpu_custom_call.1} parent=1 // pred_fallthru
      _
    %p21 = scmp.eq.s32.totalorder 0, 0
    // Predicated region
    $region22: #{tpu_custom_call.1} parent=1 // pred_check
      %p22 = pneg %p21
    $region23: #{tpu_custom_call.1} parent=1 // pred_check_branch
      %24 = sbr.rel (%p22) target = $region25
    $region24: #{tpu_custom_call.1} parent=1 // pred_region
      %vm25 = vcmask 254976
      %26 = vst.msk [vmem:[#allocation2] sm:$0x3] %vm25, 0.0
    $region25: #{tpu_custom_call.1} parent=1 // pred_fallthru
      _
    %v27 = vld [vmem:[#allocation2] sm:$0x3]
    %v28 = vld [vmem:[%s0] sm:$0x1]
    %v29 = vld [vmem:[%s0 + $0x8] sm:$0x1]
    %v32 = vrot.slane %v29, 7
    %vm33 = vcmask 1041409
    %v34 = vsel %vm33, %v32, %v28
    %37 = vrot.lane.b32.xlu0 %v27, 32
    %v38 = vpop.permute.xlu0 %37
    %vm40 = vcmask 261120
    %v41 = vsel %vm40, %v34, %v38
    %v42 = vld [vmem:[%s1] sm:$0xff]
    %v43 = vld [vmem:[%s1 + $0x8] sm:$0xff]
    %v44 = vld [vmem:[%s1 + $0x10] sm:$0xff]
    %v45 = vld [vmem:[%s1 + $0x18] sm:$0xff]
    %v46 = vld [vmem:[%s1 + $0x20] sm:$0xff]
    %v47 = vld [vmem:[%s1 + $0x28] sm:$0xff]
    %v48 = vld [vmem:[%s1 + $0x30] sm:$0xff]
    %v49 = vld [vmem:[%s1 + $0x38] sm:$0xff]
    %v50 = vld [vmem:[%s2] sm:$0x1]
    %v52 = vlaneseq
    %v53 = vshrl.u32 %v52, 7
    %v54 = vsub.s32 0, %v53
    %v55 = vrot.slane %v50, %v54
    %vm57 = vcmask 523264
    %v59 = vsel %vm57, %v41, 0
    %61 = vmatprep.subr.mxu0 0.0
    %62 = vmatpush1.msra.mxu0 0.0
    %63 = vmatprep.subr.mxu0 0.0
    %64 = vmatpush1.msra.mxu0 0.0
    %65 = vmatprep.subr.mxu0 0.0
    %66 = vmatpush1.msra.mxu0 0.0
    %67 = vmatprep.subr.mxu0 0.0
    %68 = vmatpush1.msra.mxu0 0.0
    %69 = vmatprep.subr.mxu0 0.0
    %70 = vmatpush1.msra.mxu0 0.0
    %71 = vmatprep.subr.mxu0 0.0
    %72 = vmatpush1.msra.mxu0 0.0
    %73 = vmatprep.subr.mxu0 0.0
    %74 = vmatpush1.msra.mxu0 0.0
    %75 = vmatprep.subr.mxu0 0.0
    %76 = vmatpush1.msra.mxu0 0.0
    %77 = vmatprep.subr.mxu0 0.0
    %78 = vmatpush1.msra.mxu0 %v49
    %79 = vmatprep.subr.mxu0 0.0
    %80 = vmatpush1.msra.mxu0 %v48
    %81 = vmatprep.subr.mxu0 0.0
    %82 = vmatpush1.msra.mxu0 %v47
    %83 = vmatprep.subr.mxu0 0.0
    %84 = vmatpush1.msra.mxu0 %v46
    %85 = vmatprep.subr.mxu0 0.0
    %86 = vmatpush1.msra.mxu0 %v45
    %87 = vmatprep.subr.mxu0 0.0
    %88 = vmatpush1.msra.mxu0 %v44
    %89 = vmatprep.subr.mxu0 0.0
    %90 = vmatpush1.msra.mxu0 %v43
    %91 = vmatprep.subr.mxu0 0.0
    %92 = vmatpush1.msra.mxu0 %v42
    %93 = vmatprep.subr.mxu0 0.0
    %94 = vmatpush2.msra.mxu0 0.0
    %95 = vmatprep.subr.mxu0 0.0
    %96 = vmatpush2.msra.mxu0 0.0
    %97 = vmatprep.subr.mxu0 0.0
    %98 = vmatpush2.msra.mxu0 0.0
    %99 = vmatprep.subr.mxu0 0.0
    %100 = vmatpush2.msra.mxu0 0.0
    %101 = vmatprep.subr.mxu0 0.0
    %102 = vmatpush2.msra.mxu0 0.0
    %103 = vmatprep.subr.mxu0 0.0
    %104 = vmatpush2.msra.mxu0 0.0
    %105 = vmatprep.subr.mxu0 0.0
    %106 = vmatpush2.msra.mxu0 0.0
    %107 = vmatprep.subr.mxu0 0.0
    %108 = vmatpush2.msra.mxu0 0.0
    %109 = vmatprep.subr.mxu0 0.0
    %110 = vmatpush2.msra.mxu0 0.0
    %111 = vmatprep.subr.mxu0 0.0
    %112 = vmatpush2.msra.mxu0 0.0
    %113 = vmatprep.subr.mxu0 0.0
    %114 = vmatpush2.msra.mxu0 0.0
    %115 = vmatprep.subr.mxu0 0.0
    %116 = vmatpush2.msra.mxu0 0.0
    %117 = vmatprep.subr.mxu0 0.0
    %118 = vmatpush2.msra.mxu0 0.0
    %119 = vmatprep.subr.mxu0 0.0
    %120 = vmatpush2.msra.mxu0 0.0
    %121 = vmatprep.subr.mxu0 0.0
    %122 = vmatpush2.msra.mxu0 0.0
    %123 = vmatprep.subr.mxu0 0.0
    %124 = vmatpush2.msra.mxu0 0.0
    %125 = vmatprep.mubr.f32.mxu0 0.0
    %126 = vmatmul.mubr.f32.gmra.mxu0 %v59
    %v127 = vpop.f32.mrf.mxu0
    %v128 = vadd.f32 %v55, %v127
    %v129 = vpop.f32.mrf.mxu0
    %130 = vdwg.mxu0
    %v131 = vtanh.pop %v128
    %v132 = vld [vmem:[%s0 + $0x1] sm:$0x1]
    %v133 = vld [vmem:[%s0 + $0x9] sm:$0x1]
    %v136 = vrot.slane %v133, 7
    %v137 = vsel %vm33, %v136, %v132
    %140 = vrot.lane.b32.xlu0 %v131, 32
    %v141 = vpop.permute.xlu0 %140
    %v143 = vsel %vm40, %v137, %v141
    %v145 = vsel %vm57, %v143, 0
    %147 = vmatprep.subr.mxu0 0.0
    %148 = vmatpush1.msra.mxu0 0.0
    %149 = vmatprep.subr.mxu0 0.0
    %150 = vmatpush1.msra.mxu0 0.0
    %151 = vmatprep.subr.mxu0 0.0
    %152 = vmatpush1.msra.mxu0 0.0
    %153 = vmatprep.subr.mxu0 0.0
    %154 = vmatpush1.msra.mxu0 0.0
    %155 = vmatprep.subr.mxu0 0.0
    %156 = vmatpush1.msra.mxu0 0.0
    %157 = vmatprep.subr.mxu0 0.0
    %158 = vmatpush1.msra.mxu0 0.0
    %159 = vmatprep.subr.mxu0 0.0
    %160 = vmatpush1.msra.mxu0 0.0
    %161 = vmatprep.subr.mxu0 0.0
    %162 = vmatpush1.msra.mxu0 0.0
    %163 = vmatprep.subr.mxu0 0.0
    %164 = vmatpush1.msra.mxu0 %v49
    %165 = vmatprep.subr.mxu0 0.0
    %166 = vmatpush1.msra.mxu0 %v48
    %167 = vmatprep.subr.mxu0 0.0
    %168 = vmatpush1.msra.mxu0 %v47
    %169 = vmatprep.subr.mxu0 0.0
    %170 = vmatpush1.msra.mxu0 %v46
    %171 = vmatprep.subr.mxu0 0.0
    %172 = vmatpush1.msra.mxu0 %v45
    %173 = vmatprep.subr.mxu0 0.0
    %174 = vmatpush1.msra.mxu0 %v44
    %175 = vmatprep.subr.mxu0 0.0
    %176 = vmatpush1.msra.mxu0 %v43
    %177 = vmatprep.subr.mxu0 0.0
    %178 = vmatpush1.msra.mxu0 %v42
    %179 = vmatprep.subr.mxu0 0.0
    %180 = vmatpush2.msra.mxu0 0.0
    %181 = vmatprep.subr.mxu0 0.0
    %182 = vmatpush2.msra.mxu0 0.0
    %183 = vmatprep.subr.mxu0 0.0
    %184 = vmatpush2.msra.mxu0 0.0
    %185 = vmatprep.subr.mxu0 0.0
    %186 = vmatpush2.msra.mxu0 0.0
    %187 = vmatprep.subr.mxu0 0.0
    %188 = vmatpush2.msra.mxu0 0.0
    %189 = vmatprep.subr.mxu0 0.0
    %190 = vmatpush2.msra.mxu0 0.0
    %191 = vmatprep.subr.mxu0 0.0
    %192 = vmatpush2.msra.mxu0 0.0
    %193 = vmatprep.subr.mxu0 0.0
    %194 = vmatpush2.msra.mxu0 0.0
    %195 = vmatprep.subr.mxu0 0.0
    %196 = vmatpush2.msra.mxu0 0.0
    %197 = vmatprep.subr.mxu0 0.0
    %198 = vmatpush2.msra.mxu0 0.0
    %199 = vmatprep.subr.mxu0 0.0
    %200 = vmatpush2.msra.mxu0 0.0
    %201 = vmatprep.subr.mxu0 0.0
    %202 = vmatpush2.msra.mxu0 0.0
    %203 = vmatprep.subr.mxu0 0.0
    %204 = vmatpush2.msra.mxu0 0.0
    %205 = vmatprep.subr.mxu0 0.0
    %206 = vmatpush2.msra.mxu0 0.0
    %207 = vmatprep.subr.mxu0 0.0
    %208 = vmatpush2.msra.mxu0 0.0
    %209 = vmatprep.subr.mxu0 0.0
    %210 = vmatpush2.msra.mxu0 0.0
    %211 = vmatprep.mubr.f32.mxu0 0.0
    %212 = vmatmul.mubr.f32.gmra.mxu0 %v145
    %v213 = vpop.f32.mrf.mxu0
    %v214 = vadd.f32 %v55, %v213
    %v215 = vpop.f32.mrf.mxu0
    %216 = vdwg.mxu0
    %v217 = vtanh.pop %v214
    %v218 = vld [vmem:[%s0 + $0x2] sm:$0x1]
    %v219 = vld [vmem:[%s0 + $0xa] sm:$0x1]
    %v222 = vrot.slane %v219, 7
    %v223 = vsel %vm33, %v222, %v218
    %226 = vrot.lane.b32.xlu0 %v217, 32
    %v227 = vpop.permute.xlu0 %226
    %v229 = vsel %vm40, %v223, %v227
    %v231 = vsel %vm57, %v229, 0
    %233 = vmatprep.subr.mxu0 0.0
    %234 = vmatpush1.msra.mxu0 0.0
    %235 = vmatprep.subr.mxu0 0.0
    %236 = vmatpush1.msra.mxu0 0.0
    %237 = vmatprep.subr.mxu0 0.0
    %238 = vmatpush1.msra.mxu0 0.0
    %239 = vmatprep.subr.mxu0 0.0
    %240 = vmatpush1.msra.mxu0 0.0
    %241 = vmatprep.subr.mxu0 0.0
    %242 = vmatpush1.msra.mxu0 0.0
    %243 = vmatprep.subr.mxu0 0.0
    %244 = vmatpush1.msra.mxu0 0.0
    %245 = vmatprep.subr.mxu0 0.0
    %246 = vmatpush1.msra.mxu0 0.0
    %247 = vmatprep.subr.mxu0 0.0
    %248 = vmatpush1.msra.mxu0 0.0
    %249 = vmatprep.subr.mxu0 0.0
    %250 = vmatpush1.msra.mxu0 %v49
    %251 = vmatprep.subr.mxu0 0.0
    %252 = vmatpush1.msra.mxu0 %v48
    %253 = vmatprep.subr.mxu0 0.0
    %254 = vmatpush1.msra.mxu0 %v47
    %255 = vmatprep.subr.mxu0 0.0
    %256 = vmatpush1.msra.mxu0 %v46
    %257 = vmatprep.subr.mxu0 0.0
    %258 = vmatpush1.msra.mxu0 %v45
    %259 = vmatprep.subr.mxu0 0.0
    %260 = vmatpush1.msra.mxu0 %v44
    %261 = vmatprep.subr.mxu0 0.0
    %262 = vmatpush1.msra.mxu0 %v43
    %263 = vmatprep.subr.mxu0 0.0
    %264 = vmatpush1.msra.mxu0 %v42
    %265 = vmatprep.subr.mxu0 0.0
    %266 = vmatpush2.msra.mxu0 0.0
    %267 = vmatprep.subr.mxu0 0.0
    %268 = vmatpush2.msra.mxu0 0.0
    %269 = vmatprep.subr.mxu0 0.0
    %270 = vmatpush2.msra.mxu0 0.0
    %271 = vmatprep.subr.mxu0 0.0
    %272 = vmatpush2.msra.mxu0 0.0
    %273 = vmatprep.subr.mxu0 0.0
    %274 = vmatpush2.msra.mxu0 0.0
    %275 = vmatprep.subr.mxu0 0.0
    %276 = vmatpush2.msra.mxu0 0.0
    %277 = vmatprep.subr.mxu0 0.0
    %278 = vmatpush2.msra.mxu0 0.0
    %279 = vmatprep.subr.mxu0 0.0
    %280 = vmatpush2.msra.mxu0 0.0
    %281 = vmatprep.subr.mxu0 0.0
    %282 = vmatpush2.msra.mxu0 0.0
    %283 = vmatprep.subr.mxu0 0.0
    %284 = vmatpush2.msra.mxu0 0.0
    %285 = vmatprep.subr.mxu0 0.0
    %286 = vmatpush2.msra.mxu0 0.0
    %287 = vmatprep.subr.mxu0 0.0
    %288 = vmatpush2.msra.mxu0 0.0
    %289 = vmatprep.subr.mxu0 0.0
    %290 = vmatpush2.msra.mxu0 0.0
    %291 = vmatprep.subr.mxu0 0.0
    %292 = vmatpush2.msra.mxu0 0.0
    %293 = vmatprep.subr.mxu0 0.0
    %294 = vmatpush2.msra.mxu0 0.0
    %295 = vmatprep.subr.mxu0 0.0
    %296 = vmatpush2.msra.mxu0 0.0
    %297 = vmatprep.mubr.f32.mxu0 0.0
    %298 = vmatmul.mubr.f32.gmra.mxu0 %v231
    %v299 = vpop.f32.mrf.mxu0
    %v300 = vadd.f32 %v55, %v299
    %v301 = vpop.f32.mrf.mxu0
    %302 = vdwg.mxu0
    %v303 = vtanh.pop %v300
    %v304 = vld [vmem:[%s0 + $0x3] sm:$0x1]
    %v305 = vld [vmem:[%s0 + $0xb] sm:$0x1]
    %v308 = vrot.slane %v305, 7
    %v309 = vsel %vm33, %v308, %v304
    %312 = vrot.lane.b32.xlu0 %v303, 32
    %v313 = vpop.permute.xlu0 %312
    %v315 = vsel %vm40, %v309, %v313
    %v317 = vsel %vm57, %v315, 0
    %319 = vmatprep.subr.mxu0 0.0
    %320 = vmatpush1.msra.mxu0 0.0
    %321 = vmatprep.subr.mxu0 0.0
    %322 = vmatpush1.msra.mxu0 0.0
    %323 = vmatprep.subr.mxu0 0.0
    %324 = vmatpush1.msra.mxu0 0.0
    %325 = vmatprep.subr.mxu0 0.0
    %326 = vmatpush1.msra.mxu0 0.0
    %327 = vmatprep.subr.mxu0 0.0
    %328 = vmatpush1.msra.mxu0 0.0
    %329 = vmatprep.subr.mxu0 0.0
    %330 = vmatpush1.msra.mxu0 0.0
    %331 = vmatprep.subr.mxu0 0.0
    %332 = vmatpush1.msra.mxu0 0.0
    %333 = vmatprep.subr.mxu0 0.0
    %334 = vmatpush1.msra.mxu0 0.0
    %335 = vmatprep.subr.mxu0 0.0
    %336 = vmatpush1.msra.mxu0 %v49
    %337 = vmatprep.subr.mxu0 0.0
    %338 = vmatpush1.msra.mxu0 %v48
    %339 = vmatprep.subr.mxu0 0.0
    %340 = vmatpush1.msra.mxu0 %v47
    %341 = vmatprep.subr.mxu0 0.0
    %342 = vmatpush1.msra.mxu0 %v46
    %343 = vmatprep.subr.mxu0 0.0
    %344 = vmatpush1.msra.mxu0 %v45
    %345 = vmatprep.subr.mxu0 0.0
    %346 = vmatpush1.msra.mxu0 %v44
    %347 = vmatprep.subr.mxu0 0.0
    %348 = vmatpush1.msra.mxu0 %v43
    %349 = vmatprep.subr.mxu0 0.0
    %350 = vmatpush1.msra.mxu0 %v42
    %351 = vmatprep.subr.mxu0 0.0
    %352 = vmatpush2.msra.mxu0 0.0
    %353 = vmatprep.subr.mxu0 0.0
    %354 = vmatpush2.msra.mxu0 0.0
    %355 = vmatprep.subr.mxu0 0.0
    %356 = vmatpush2.msra.mxu0 0.0
    %357 = vmatprep.subr.mxu0 0.0
    %358 = vmatpush2.msra.mxu0 0.0
    %359 = vmatprep.subr.mxu0 0.0
    %360 = vmatpush2.msra.mxu0 0.0
    %361 = vmatprep.subr.mxu0 0.0
    %362 = vmatpush2.msra.mxu0 0.0
    %363 = vmatprep.subr.mxu0 0.0
    %364 = vmatpush2.msra.mxu0 0.0
    %365 = vmatprep.subr.mxu0 0.0
    %366 = vmatpush2.msra.mxu0 0.0
    %367 = vmatprep.subr.mxu0 0.0
    %368 = vmatpush2.msra.mxu0 0.0
    %369 = vmatprep.subr.mxu0 0.0
    %370 = vmatpush2.msra.mxu0 0.0
    %371 = vmatprep.subr.mxu0 0.0
    %372 = vmatpush2.msra.mxu0 0.0
    %373 = vmatprep.subr.mxu0 0.0
    %374 = vmatpush2.msra.mxu0 0.0
    %375 = vmatprep.subr.mxu0 0.0
    %376 = vmatpush2.msra.mxu0 0.0
    %377 = vmatprep.subr.mxu0 0.0
    %378 = vmatpush2.msra.mxu0 0.0
    %379 = vmatprep.subr.mxu0 0.0
    %380 = vmatpush2.msra.mxu0 0.0
    %381 = vmatprep.subr.mxu0 0.0
    %382 = vmatpush2.msra.mxu0 0.0
    %383 = vmatprep.mubr.f32.mxu0 0.0
    %384 = vmatmul.mubr.f32.gmra.mxu0 %v317
    %v385 = vpop.f32.mrf.mxu0
    %v386 = vadd.f32 %v55, %v385
    %v387 = vpop.f32.mrf.mxu0
    %388 = vdwg.mxu0
    %v389 = vtanh.pop %v386
    %v390 = vld [vmem:[%s0 + $0x4] sm:$0x1]
    %v391 = vld [vmem:[%s0 + $0xc] sm:$0x1]
    %v394 = vrot.slane %v391, 7
    %v395 = vsel %vm33, %v394, %v390
    %398 = vrot.lane.b32.xlu0 %v389, 32
    %v399 = vpop.permute.xlu0 %398
    %v401 = vsel %vm40, %v395, %v399
    %v403 = vsel %vm57, %v401, 0
    %405 = vmatprep.subr.mxu0 0.0
    %406 = vmatpush1.msra.mxu0 0.0
    %407 = vmatprep.subr.mxu0 0.0
    %408 = vmatpush1.msra.mxu0 0.0
    %409 = vmatprep.subr.mxu0 0.0
    %410 = vmatpush1.msra.mxu0 0.0
    %411 = vmatprep.subr.mxu0 0.0
    %412 = vmatpush1.msra.mxu0 0.0
    %413 = vmatprep.subr.mxu0 0.0
    %414 = vmatpush1.msra.mxu0 0.0
    %415 = vmatprep.subr.mxu0 0.0
    %416 = vmatpush1.msra.mxu0 0.0
    %417 = vmatprep.subr.mxu0 0.0
    %418 = vmatpush1.msra.mxu0 0.0
    %419 = vmatprep.subr.mxu0 0.0
    %420 = vmatpush1.msra.mxu0 0.0
    %421 = vmatprep.subr.mxu0 0.0
    %422 = vmatpush1.msra.mxu0 %v49
    %423 = vmatprep.subr.mxu0 0.0
    %424 = vmatpush1.msra.mxu0 %v48
    %425 = vmatprep.subr.mxu0 0.0
    %426 = vmatpush1.msra.mxu0 %v47
    %427 = vmatprep.subr.mxu0 0.0
    %428 = vmatpush1.msra.mxu0 %v46
    %429 = vmatprep.subr.mxu0 0.0
    %430 = vmatpush1.msra.mxu0 %v45
    %431 = vmatprep.subr.mxu0 0.0
    %432 = vmatpush1.msra.mxu0 %v44
    %433 = vmatprep.subr.mxu0 0.0
    %434 = vmatpush1.msra.mxu0 %v43
    %435 = vmatprep.subr.mxu0 0.0
    %436 = vmatpush1.msra.mxu0 %v42
    %437 = vmatprep.subr.mxu0 0.0
    %438 = vmatpush2.msra.mxu0 0.0
    %439 = vmatprep.subr.mxu0 0.0
    %440 = vmatpush2.msra.mxu0 0.0
    %441 = vmatprep.subr.mxu0 0.0
    %442 = vmatpush2.msra.mxu0 0.0
    %443 = vmatprep.subr.mxu0 0.0
    %444 = vmatpush2.msra.mxu0 0.0
    %445 = vmatprep.subr.mxu0 0.0
    %446 = vmatpush2.msra.mxu0 0.0
    %447 = vmatprep.subr.mxu0 0.0
    %448 = vmatpush2.msra.mxu0 0.0
    %449 = vmatprep.subr.mxu0 0.0
    %450 = vmatpush2.msra.mxu0 0.0
    %451 = vmatprep.subr.mxu0 0.0
    %452 = vmatpush2.msra.mxu0 0.0
    %453 = vmatprep.subr.mxu0 0.0
    %454 = vmatpush2.msra.mxu0 0.0
    %455 = vmatprep.subr.mxu0 0.0
    %456 = vmatpush2.msra.mxu0 0.0
    %457 = vmatprep.subr.mxu0 0.0
    %458 = vmatpush2.msra.mxu0 0.0
    %459 = vmatprep.subr.mxu0 0.0
    %460 = vmatpush2.msra.mxu0 0.0
    %461 = vmatprep.subr.mxu0 0.0
    %462 = vmatpush2.msra.mxu0 0.0
    %463 = vmatprep.subr.mxu0 0.0
    %464 = vmatpush2.msra.mxu0 0.0
    %465 = vmatprep.subr.mxu0 0.0
    %466 = vmatpush2.msra.mxu0 0.0
    %467 = vmatprep.subr.mxu0 0.0
    %468 = vmatpush2.msra.mxu0 0.0
    %469 = vmatprep.mubr.f32.mxu0 0.0
    %470 = vmatmul.mubr.f32.gmra.mxu0 %v403
    %v471 = vpop.f32.mrf.mxu0
    %v472 = vadd.f32 %v55, %v471
    %v473 = vpop.f32.mrf.mxu0
    %474 = vdwg.mxu0
    %v475 = vtanh.pop %v472
    %v476 = vld [vmem:[%s0 + $0x5] sm:$0x1]
    %v477 = vld [vmem:[%s0 + $0xd] sm:$0x1]
    %v480 = vrot.slane %v477, 7
    %v481 = vsel %vm33, %v480, %v476
    %484 = vrot.lane.b32.xlu0 %v475, 32
    %v485 = vpop.permute.xlu0 %484
    %v487 = vsel %vm40, %v481, %v485
    %v489 = vsel %vm57, %v487, 0
    %491 = vmatprep.subr.mxu0 0.0
    %492 = vmatpush1.msra.mxu0 0.0
    %493 = vmatprep.subr.mxu0 0.0
    %494 = vmatpush1.msra.mxu0 0.0
    %495 = vmatprep.subr.mxu0 0.0
    %496 = vmatpush1.msra.mxu0 0.0
    %497 = vmatprep.subr.mxu0 0.0
    %498 = vmatpush1.msra.mxu0 0.0
    %499 = vmatprep.subr.mxu0 0.0
    %500 = vmatpush1.msra.mxu0 0.0
    %501 = vmatprep.subr.mxu0 0.0
    %502 = vmatpush1.msra.mxu0 0.0
    %503 = vmatprep.subr.mxu0 0.0
    %504 = vmatpush1.msra.mxu0 0.0
    %505 = vmatprep.subr.mxu0 0.0
    %506 = vmatpush1.msra.mxu0 0.0
    %507 = vmatprep.subr.mxu0 0.0
    %508 = vmatpush1.msra.mxu0 %v49
    %509 = vmatprep.subr.mxu0 0.0
    %510 = vmatpush1.msra.mxu0 %v48
    %511 = vmatprep.subr.mxu0 0.0
    %512 = vmatpush1.msra.mxu0 %v47
    %513 = vmatprep.subr.mxu0 0.0
    %514 = vmatpush1.msra.mxu0 %v46
    %515 = vmatprep.subr.mxu0 0.0
    %516 = vmatpush1.msra.mxu0 %v45
    %517 = vmatprep.subr.mxu0 0.0
    %518 = vmatpush1.msra.mxu0 %v44
    %519 = vmatprep.subr.mxu0 0.0
    %520 = vmatpush1.msra.mxu0 %v43
    %521 = vmatprep.subr.mxu0 0.0
    %522 = vmatpush1.msra.mxu0 %v42
    %523 = vmatprep.subr.mxu0 0.0
    %524 = vmatpush2.msra.mxu0 0.0
    %525 = vmatprep.subr.mxu0 0.0
    %526 = vmatpush2.msra.mxu0 0.0
    %527 = vmatprep.subr.mxu0 0.0
    %528 = vmatpush2.msra.mxu0 0.0
    %529 = vmatprep.subr.mxu0 0.0
    %530 = vmatpush2.msra.mxu0 0.0
    %531 = vmatprep.subr.mxu0 0.0
    %532 = vmatpush2.msra.mxu0 0.0
    %533 = vmatprep.subr.mxu0 0.0
    %534 = vmatpush2.msra.mxu0 0.0
    %535 = vmatprep.subr.mxu0 0.0
    %536 = vmatpush2.msra.mxu0 0.0
    %537 = vmatprep.subr.mxu0 0.0
    %538 = vmatpush2.msra.mxu0 0.0
    %539 = vmatprep.subr.mxu0 0.0
    %540 = vmatpush2.msra.mxu0 0.0
    %541 = vmatprep.subr.mxu0 0.0
    %542 = vmatpush2.msra.mxu0 0.0
    %543 = vmatprep.subr.mxu0 0.0
    %544 = vmatpush2.msra.mxu0 0.0
    %545 = vmatprep.subr.mxu0 0.0
    %546 = vmatpush2.msra.mxu0 0.0
    %547 = vmatprep.subr.mxu0 0.0
    %548 = vmatpush2.msra.mxu0 0.0
    %549 = vmatprep.subr.mxu0 0.0
    %550 = vmatpush2.msra.mxu0 0.0
    %551 = vmatprep.subr.mxu0 0.0
    %552 = vmatpush2.msra.mxu0 0.0
    %553 = vmatprep.subr.mxu0 0.0
    %554 = vmatpush2.msra.mxu0 0.0
    %555 = vmatprep.mubr.f32.mxu0 0.0
    %556 = vmatmul.mubr.f32.gmra.mxu0 %v489
    %v557 = vpop.f32.mrf.mxu0
    %v558 = vadd.f32 %v55, %v557
    %v559 = vpop.f32.mrf.mxu0
    %560 = vdwg.mxu0
    %v561 = vtanh.pop %v558
    %v562 = vld [vmem:[%s0 + $0x6] sm:$0x1]
    %v563 = vld [vmem:[%s0 + $0xe] sm:$0x1]
    %v566 = vrot.slane %v563, 7
    %v567 = vsel %vm33, %v566, %v562
    %570 = vrot.lane.b32.xlu0 %v561, 32
    %v571 = vpop.permute.xlu0 %570
    %v573 = vsel %vm40, %v567, %v571
    %v575 = vsel %vm57, %v573, 0
    %577 = vmatprep.subr.mxu0 0.0
    %578 = vmatpush1.msra.mxu0 0.0
    %579 = vmatprep.subr.mxu0 0.0
    %580 = vmatpush1.msra.mxu0 0.0
    %581 = vmatprep.subr.mxu0 0.0
    %582 = vmatpush1.msra.mxu0 0.0
    %583 = vmatprep.subr.mxu0 0.0
    %584 = vmatpush1.msra.mxu0 0.0
    %585 = vmatprep.subr.mxu0 0.0
    %586 = vmatpush1.msra.mxu0 0.0
    %587 = vmatprep.subr.mxu0 0.0
    %588 = vmatpush1.msra.mxu0 0.0
    %589 = vmatprep.subr.mxu0 0.0
    %590 = vmatpush1.msra.mxu0 0.0
    %591 = vmatprep.subr.mxu0 0.0
    %592 = vmatpush1.msra.mxu0 0.0
    %593 = vmatprep.subr.mxu0 0.0
    %594 = vmatpush1.msra.mxu0 %v49
    %595 = vmatprep.subr.mxu0 0.0
    %596 = vmatpush1.msra.mxu0 %v48
    %597 = vmatprep.subr.mxu0 0.0
    %598 = vmatpush1.msra.mxu0 %v47
    %599 = vmatprep.subr.mxu0 0.0
    %600 = vmatpush1.msra.mxu0 %v46
    %601 = vmatprep.subr.mxu0 0.0
    %602 = vmatpush1.msra.mxu0 %v45
    %603 = vmatprep.subr.mxu0 0.0
    %604 = vmatpush1.msra.mxu0 %v44
    %605 = vmatprep.subr.mxu0 0.0
    %606 = vmatpush1.msra.mxu0 %v43
    %607 = vmatprep.subr.mxu0 0.0
    %608 = vmatpush1.msra.mxu0 %v42
    %609 = vmatprep.subr.mxu0 0.0
    %610 = vmatpush2.msra.mxu0 0.0
    %611 = vmatprep.subr.mxu0 0.0
    %612 = vmatpush2.msra.mxu0 0.0
    %613 = vmatprep.subr.mxu0 0.0
    %614 = vmatpush2.msra.mxu0 0.0
    %615 = vmatprep.subr.mxu0 0.0
    %616 = vmatpush2.msra.mxu0 0.0
    %617 = vmatprep.subr.mxu0 0.0
    %618 = vmatpush2.msra.mxu0 0.0
    %619 = vmatprep.subr.mxu0 0.0
    %620 = vmatpush2.msra.mxu0 0.0
    %621 = vmatprep.subr.mxu0 0.0
    %622 = vmatpush2.msra.mxu0 0.0
    %623 = vmatprep.subr.mxu0 0.0
    %624 = vmatpush2.msra.mxu0 0.0
    %625 = vmatprep.subr.mxu0 0.0
    %626 = vmatpush2.msra.mxu0 0.0
    %627 = vmatprep.subr.mxu0 0.0
    %628 = vmatpush2.msra.mxu0 0.0
    %629 = vmatprep.subr.mxu0 0.0
    %630 = vmatpush2.msra.mxu0 0.0
    %631 = vmatprep.subr.mxu0 0.0
    %632 = vmatpush2.msra.mxu0 0.0
    %633 = vmatprep.subr.mxu0 0.0
    %634 = vmatpush2.msra.mxu0 0.0
    %635 = vmatprep.subr.mxu0 0.0
    %636 = vmatpush2.msra.mxu0 0.0
    %637 = vmatprep.subr.mxu0 0.0
    %638 = vmatpush2.msra.mxu0 0.0
    %639 = vmatprep.subr.mxu0 0.0
    %640 = vmatpush2.msra.mxu0 0.0
    %641 = vmatprep.mubr.f32.mxu0 0.0
    %642 = vmatmul.mubr.f32.gmra.mxu0 %v575
    %v643 = vpop.f32.mrf.mxu0
    %v644 = vadd.f32 %v55, %v643
    %v645 = vpop.f32.mrf.mxu0
    %646 = vdwg.mxu0
    %v647 = vtanh.pop %v644
    %v648 = vld [vmem:[%s0 + $0x7] sm:$0x1]
    %v649 = vld [vmem:[%s0 + $0xf] sm:$0x1]
    %v652 = vrot.slane %v649, 7
    %v653 = vsel %vm33, %v652, %v648
    %656 = vrot.lane.b32.xlu0 %v647, 32
    %v657 = vpop.permute.xlu0 %656
    %v659 = vsel %vm40, %v653, %v657
    %v661 = vsel %vm57, %v659, 0
    %663 = vmatprep.subr.mxu0 0.0
    %664 = vmatpush1.msra.mxu0 0.0
    %665 = vmatprep.subr.mxu0 0.0
    %666 = vmatpush1.msra.mxu0 0.0
    %667 = vmatprep.subr.mxu0 0.0
    %668 = vmatpush1.msra.mxu0 0.0
    %669 = vmatprep.subr.mxu0 0.0
    %670 = vmatpush1.msra.mxu0 0.0
    %671 = vmatprep.subr.mxu0 0.0
    %672 = vmatpush1.msra.mxu0 0.0
    %673 = vmatprep.subr.mxu0 0.0
    %674 = vmatpush1.msra.mxu0 0.0
    %675 = vmatprep.subr.mxu0 0.0
    %676 = vmatpush1.msra.mxu0 0.0
    %677 = vmatprep.subr.mxu0 0.0
    %678 = vmatpush1.msra.mxu0 0.0
    %679 = vmatprep.subr.mxu0 0.0
    %680 = vmatpush1.msra.mxu0 %v49
    %681 = vmatprep.subr.mxu0 0.0
    %682 = vmatpush1.msra.mxu0 %v48
    %683 = vmatprep.subr.mxu0 0.0
    %684 = vmatpush1.msra.mxu0 %v47
    %685 = vmatprep.subr.mxu0 0.0
    %686 = vmatpush1.msra.mxu0 %v46
    %687 = vmatprep.subr.mxu0 0.0
    %688 = vmatpush1.msra.mxu0 %v45
    %689 = vmatprep.subr.mxu0 0.0
    %690 = vmatpush1.msra.mxu0 %v44
    %691 = vmatprep.subr.mxu0 0.0
    %692 = vmatpush1.msra.mxu0 %v43
    %693 = vmatprep.subr.mxu0 0.0
    %694 = vmatpush1.msra.mxu0 %v42
    %695 = vmatprep.subr.mxu0 0.0
    %696 = vmatpush2.msra.mxu0 0.0
    %697 = vmatprep.subr.mxu0 0.0
    %698 = vmatpush2.msra.mxu0 0.0
    %699 = vmatprep.subr.mxu0 0.0
    %700 = vmatpush2.msra.mxu0 0.0
    %701 = vmatprep.subr.mxu0 0.0
    %702 = vmatpush2.msra.mxu0 0.0
    %703 = vmatprep.subr.mxu0 0.0
    %704 = vmatpush2.msra.mxu0 0.0
    %705 = vmatprep.subr.mxu0 0.0
    %706 = vmatpush2.msra.mxu0 0.0
    %707 = vmatprep.subr.mxu0 0.0
    %708 = vmatpush2.msra.mxu0 0.0
    %709 = vmatprep.subr.mxu0 0.0
    %710 = vmatpush2.msra.mxu0 0.0
    %711 = vmatprep.subr.mxu0 0.0
    %712 = vmatpush2.msra.mxu0 0.0
    %713 = vmatprep.subr.mxu0 0.0
    %714 = vmatpush2.msra.mxu0 0.0
    %715 = vmatprep.subr.mxu0 0.0
    %716 = vmatpush2.msra.mxu0 0.0
    %717 = vmatprep.subr.mxu0 0.0
    %718 = vmatpush2.msra.mxu0 0.0
    %719 = vmatprep.subr.mxu0 0.0
    %720 = vmatpush2.msra.mxu0 0.0
    %721 = vmatprep.subr.mxu0 0.0
    %722 = vmatpush2.msra.mxu0 0.0
    %723 = vmatprep.subr.mxu0 0.0
    %724 = vmatpush2.msra.mxu0 0.0
    %725 = vmatprep.subr.mxu0 0.0
    %726 = vmatpush2.msra.mxu0 0.0
    %727 = vmatprep.mubr.f32.mxu0 0.0
    %728 = vmatmul.mubr.f32.gmra.mxu0 %v661
    %v729 = vpop.f32.mrf.mxu0
    %v730 = vadd.f32 %v55, %v729
    %v731 = vpop.f32.mrf.mxu0
    %732 = vdwg.mxu0
    %v733 = vtanh.pop %v730
    %vm734 = vcmask 254976
    %735 = vst.msk [vmem:[#allocation2] sm:$0x3] %vm734, %v733
    // Predicated region
    $region26: #{tpu_custom_call.1} parent=1 // pred_check
      %p736 = pneg %p21
    $region27: #{tpu_custom_call.1} parent=1 // pred_check_branch
      %738 = sbr.rel (%p736) target = $region29
    $region28: #{tpu_custom_call.1} parent=1 // pred_region
      %v739 = vld [vmem:[%s3] sm:$0xff]
      %v740 = vld [vmem:[%s3 + $0x8] sm:$0xff]
      %v741 = vld [vmem:[%s3 + $0x10] sm:$0xff]
      %v742 = vld [vmem:[%s3 + $0x18] sm:$0xff]
      %v743 = vld [vmem:[%s4] sm:$0x1]
      %v745 = vlaneseq
      %v746 = vshrl.u32 %v745, 7
      %v747 = vsub.s32 0, %v746
      %v748 = vrot.slane %v743, %v747
      %v751 = vsel %vm40, %v733, 0
      %753 = vmatprep.subr.mxu0 0.0
      %754 = vmatpush1.msra.mxu0 0.0
      %755 = vmatprep.subr.mxu0 0.0
      %756 = vmatpush1.msra.mxu0 0.0
      %757 = vmatprep.subr.mxu0 0.0
      %758 = vmatpush1.msra.mxu0 0.0
      %759 = vmatprep.subr.mxu0 0.0
      %760 = vmatpush1.msra.mxu0 0.0
      %761 = vmatprep.subr.mxu0 0.0
      %762 = vmatpush1.msra.mxu0 0.0
      %763 = vmatprep.subr.mxu0 0.0
      %764 = vmatpush1.msra.mxu0 0.0
      %765 = vmatprep.subr.mxu0 0.0
      %766 = vmatpush1.msra.mxu0 0.0
      %767 = vmatprep.subr.mxu0 0.0
      %768 = vmatpush1.msra.mxu0 0.0
      %769 = vmatprep.subr.mxu0 0.0
      %770 = vmatpush1.msra.mxu0 0.0
      %771 = vmatprep.subr.mxu0 0.0
      %772 = vmatpush1.msra.mxu0 0.0
      %773 = vmatprep.subr.mxu0 0.0
      %774 = vmatpush1.msra.mxu0 0.0
      %775 = vmatprep.subr.mxu0 0.0
      %776 = vmatpush1.msra.mxu0 0.0
      %777 = vmatprep.subr.mxu0 0.0
      %778 = vmatpush1.msra.mxu0 %v742
      %779 = vmatprep.subr.mxu0 0.0
      %780 = vmatpush1.msra.mxu0 %v741
      %781 = vmatprep.subr.mxu0 0.0
      %782 = vmatpush1.msra.mxu0 %v740
      %783 = vmatprep.subr.mxu0 0.0
      %784 = vmatpush1.msra.mxu0 %v739
      %785 = vmatprep.subr.mxu0 0.0
      %786 = vmatpush2.msra.mxu0 0.0
      %787 = vmatprep.subr.mxu0 0.0
      %788 = vmatpush2.msra.mxu0 0.0
      %789 = vmatprep.subr.mxu0 0.0
      %790 = vmatpush2.msra.mxu0 0.0
      %791 = vmatprep.subr.mxu0 0.0
      %792 = vmatpush2.msra.mxu0 0.0
      %793 = vmatprep.subr.mxu0 0.0
      %794 = vmatpush2.msra.mxu0 0.0
      %795 = vmatprep.subr.mxu0 0.0
      %796 = vmatpush2.msra.mxu0 0.0
      %797 = vmatprep.subr.mxu0 0.0
      %798 = vmatpush2.msra.mxu0 0.0
      %799 = vmatprep.subr.mxu0 0.0
      %800 = vmatpush2.msra.mxu0 0.0
      %801 = vmatprep.subr.mxu0 0.0
      %802 = vmatpush2.msra.mxu0 0.0
      %803 = vmatprep.subr.mxu0 0.0
      %804 = vmatpush2.msra.mxu0 0.0
      %805 = vmatprep.subr.mxu0 0.0
      %806 = vmatpush2.msra.mxu0 0.0
      %807 = vmatprep.subr.mxu0 0.0
      %808 = vmatpush2.msra.mxu0 0.0
      %809 = vmatprep.subr.mxu0 0.0
      %810 = vmatpush2.msra.mxu0 0.0
      %811 = vmatprep.subr.mxu0 0.0
      %812 = vmatpush2.msra.mxu0 0.0
      %813 = vmatprep.subr.mxu0 0.0
      %814 = vmatpush2.msra.mxu0 0.0
      %815 = vmatprep.subr.mxu0 0.0
      %816 = vmatpush2.msra.mxu0 0.0
      %817 = vmatprep.mubr.f32.mxu0 0.0
      %818 = vmatmul.mubr.f32.gmra.mxu0 %v751
      %v819 = vpop.f32.mrf.mxu0
      %v820 = vadd.f32 %v748, %v819
      %v821 = vpop.f32.mrf.mxu0
      %822 = vdwg.mxu0
      %vm823 = vcmask 9216
      %824 = vst.msk [vmem:[#allocation3] sm:$0x3] %vm823, %v820
    $region29: #{tpu_custom_call.1} parent=1 // pred_fallthru
      _
    // Predicated region
    $region30: #{tpu_custom_call.1} parent=1 // pred_check
      _
    $region31: #{tpu_custom_call.1} parent=1 // pred_check_branch
      %826 = sbr.rel (0) target = $region33
    $region32: #{tpu_custom_call.1} parent=1 // pred_region
      %s828 = ssub.s32 32, 32
      %829 = vsyncadd [#allocation4], %s828
      %s831 = sshll.u32 [#allocation3], 4
      %s832 = int_to_ptr.vmem [resolvable:$true] %s831
      %834 = dma.vmem_to_hbm [thread:$0]  %s832, 32, %s5, [#allocation4]
    $region33: #{tpu_custom_call.1} parent=1 // pred_fallthru
      _
    // Predicated region
    $region34: #{tpu_custom_call.1} parent=1 // pred_check
      _
    $region35: #{tpu_custom_call.1} parent=1 // pred_check_branch
      %836 = sbr.rel (0) target = $region37
    $region36: #{tpu_custom_call.1} parent=1 // pred_region
      %837 = dma.done [#allocation4], 32
    $region37: #{tpu_custom_call.1} parent=1 // pred_fallthru
      _
    %838 = vsyncpa [#allocation4], 1

</llo_original>
